<compile_context>
chip_gen: v5e
topology: v5e:2x2
jax: 0.10.0
libtpu: 0.0.40
codegen_flags: <defaults>
</compile_context>

<pallas_src>
import math

import jax
import jax.numpy as jnp
from jax.experimental import pallas as pl
from jax.experimental.pallas import tpu as pltpu

_LANE = 128
_SUBLANE = 8
_MAX_TILE_ROWS = 8192          # absolute ceiling on batch-tile rows
_V7X_SPLIT_ROWS = 1024         # split the grid into >=2 steps above this on 2-TC chips


def _round_up(n, m):
    return ((n + m - 1) // m) * m


def _cdiv(a, b):
    return -(-a // b)


def _make_fused_kernel(num_layers):
    """Kernel computing sanitize -> fused(pi|vf) MLP -> sanitize -> clamp."""

    def kernel(*refs):
        # refs = (x, w_0..w_{L-1}, b_0..b_{L-1}, posinf_vec, clamp_hi_vec, out)
        x_ref = refs[0]
        w_refs = refs[1:1 + num_layers]
        b_refs = refs[1 + num_layers:1 + 2 * num_layers]
        posinf_ref = refs[1 + 2 * num_layers]
        clamp_hi_ref = refs[2 + 2 * num_layers]
        out_ref = refs[-1]

        x = x_ref[...]
        # input sanitization (same constants for both nets): nan->0, +inf->1, -inf->-1
        x = jnp.where(jnp.isnan(x), 0.0, x)
        x = jnp.where(x == jnp.inf, 1.0, x)
        x = jnp.where(x == -jnp.inf, -1.0, x)

        # fused Linear + ReLU stack (MXU matmuls, lane-dense 128-multiple widths).
        # Default matmul precision is kept (accepting the documented looser
        # fp32 tolerance); HIGHEST would triple MXU cost for no visible gain
        # in this launch/DMA-bound kernel.
        for w_ref, b_ref in zip(w_refs, b_refs):
            x = jnp.dot(x, w_ref[...], preferred_element_type=jnp.float32)
            x = jnp.maximum(x + b_ref[...], 0.0)

        # output sanitization + clamp. Values are >= 0 after the final ReLU, so
        # both the -inf branch and the lower clamp are dead and omitted.
        # Constants differ per column block (pi vs vf), so they arrive as
        # [1, out] vectors.
        x = jnp.where(jnp.isnan(x), 0.0, x)
        x = jnp.where(x == jnp.inf, posinf_ref[...], x)
        x = jnp.minimum(x, clamp_hi_ref[...])

        out_ref[...] = x.astype(out_ref.dtype)

    return kernel


class CustomMlpExtractorPallas:
    """JAX/Pallas port of CustomMlpExtractor with a fused actor+critic kernel."""

    def __init__(self, feature_dim, net_arch, key):
        self.feature_dim = feature_dim
        self.net_arch = net_arch

        def init_stack(sizes, key):
            ws, bs = [], []
            last = feature_dim
            for layer_size in sizes:
                key, sub = jax.random.split(key)
                # xavier_normal_(gain=1.0): std = sqrt(2 / (fan_in + fan_out))
                std = math.sqrt(2.0 / (last + layer_size))
                # stored already transposed: [in, out] so the kernel does x @ W
                w = std * jax.random.normal(sub, (last, layer_size), dtype=jnp.float32)
                b = jnp.zeros((layer_size,), dtype=jnp.float32)
                ws.append(w)
                bs.append(b)
                last = layer_size
            return ws, bs, key

        self.pi_w, self.pi_b, key = init_stack(net_arch["pi"], key)
        self.vf_w, self.vf_b, key = init_stack(net_arch["vf"], key)

        self.out_pi = self.pi_w[-1].shape[1]
        self.out_vf = self.vf_w[-1].shape[1]

        self._build_fused_params()

    # ---- parameter fusion -------------------------------------------------
    def _build_fused_params(self):
        depth = max(len(self.pi_w), len(self.vf_w))
        # Identity depth-padding relies on ReLU(I @ x) == x, which only holds
        # because x >= 0 after a prior ReLU of the same net. Guard the
        # assumption explicitly.
        if len(self.pi_w) < 1 or len(self.vf_w) < 1:
            raise ValueError("net_arch['pi'] and net_arch['vf'] must each have "
                             ">= 1 layer (identity depth-padding needs a prior ReLU).")

        def pad_depth(ws, bs):
            ws, bs = list(ws), list(bs)
            while len(ws) < depth:
                d = ws[-1].shape[1]
                ws.append(jnp.eye(d, dtype=jnp.float32))
                bs.append(jnp.zeros((d,), dtype=jnp.float32))
            return ws, bs

        pi_w, pi_b = pad_depth(self.pi_w, self.pi_b)
        vf_w, vf_b = pad_depth(self.vf_w, self.vf_b)

        # K of layer 0 (feature_dim) padded to a lane-dense multiple of 128.
        feat_pad = _round_up(self.feature_dim, _LANE)
        self.feat_padded = feat_pad

        fused_w, fused_b = [], []
        # input layout: both nets read the same (padded) feature columns.
        prev_pi_start, prev_vf_start, prev_total = 0, 0, feat_pad

        for i in range(depth):
            pw, vw = pi_w[i], vf_w[i]
            pi_in, pi_out = pw.shape
            vf_in, vf_out = vw.shape
            last = (i == depth - 1)

            pi_start = 0
            # Last layer: lane-align the critic block so the wrapper's vf slice
            # starts on a 128-lane boundary. Intermediate layers stay packed.
            vf_start = _round_up(pi_out, _LANE) if last else pi_out
            total = _round_up(vf_start + vf_out, _LANE)

            w = jnp.zeros((prev_total, total), jnp.float32)
            w = w.at[prev_pi_start:prev_pi_start + pi_in,
                     pi_start:pi_start + pi_out].set(pw)
            w = w.at[prev_vf_start:prev_vf_start + vf_in,
                     vf_start:vf_start + vf_out].set(vw)
            b = jnp.zeros((1, total), jnp.float32)
            b = b.at[0, pi_start:pi_start + pi_out].set(pi_b[i])
            b = b.at[0, vf_start:vf_start + vf_out].set(vf_b[i])

            fused_w.append(w)
            fused_b.append(b)
            prev_pi_start, prev_vf_start, prev_total = pi_start, vf_start, total

        self.fused_w = fused_w
        self.fused_b = fused_b
        self.out_padded = prev_total
        self.vf_col_start = prev_vf_start
        self.max_fused_width = max([feat_pad] + [w.shape[1] for w in fused_w])

        # per-column epilogue constants (actor vs critic differ); padded cols
        # carry exact zeros and are sliced off, so their constants are arbitrary.
        posinf = jnp.zeros((1, self.out_padded), jnp.float32)
        posinf = posinf.at[0, :self.out_pi].set(2.0)
        posinf = posinf.at[0, self.vf_col_start:self.vf_col_start + self.out_vf].set(10.0)
        clamp_hi = jnp.ones((1, self.out_padded), jnp.float32)
        clamp_hi = clamp_hi.at[0, :self.out_pi].set(5.0)
        clamp_hi = clamp_hi.at[0, self.vf_col_start:self.vf_col_start + self.out_vf].set(20.0)
        self.posinf_vec = posinf
        self.clamp_hi_vec = clamp_hi

    # ---- tile / VMEM sizing (generation aware) -----------------------------
    def _plan_tiles(self, batch):
        # Physical VMEM of the local chip (fallback: conservative 64 MiB).
        vmem_cap = 64 << 20
        try:
            vmem_cap = int(getattr(pltpu.get_tpu_info(),
                                   "vmem_capacity_bytes", vmem_cap))
        except Exception:
            pass
        small_vmem = vmem_cap <= (64 << 20)       # v7x-like: 64 MiB VMEM, 2 TCs
        budget = (36 << 20) if small_vmem else (80 << 20)

        # Resident params are double-buffered by BlockSpec pipelining (tiny here;
        # pipeline_mode=Buffered(1) skipped deliberately — negligible for this net).
        resident_bytes = 4 * (sum(w.size for w in self.fused_w)
                              + sum(b.size for b in self.fused_b)
                              + 2 * self.out_padded)
        # Per-row: double-buffered input + output stream tiles plus the live
        # per-layer activation working set (spills past the 64-vreg file).
        bytes_per_row = 4 * (2 * self.feat_padded + 2 * self.out_padded
                             + 2 * self.max_fused_width)

        rows_cap = (budget - 2 * resident_bytes) // bytes_per_row
        rows_cap = max(_SUBLANE, min(int(rows_cap), _MAX_TILE_ROWS))
        tb_cap = max(_SUBLANE, (rows_cap // _SUBLANE) * _SUBLANE)

        pb8 = _round_up(max(batch, 1), _SUBLANE)
        n_steps = _cdiv(pb8, tb_cap)
        # v7x has two TensorCores: a single-step grid leaves one idle. Split
        # large batches into >= 2 "parallel" steps there; on 1-TC chips keep
        # the single largest tile.
        if small_vmem and n_steps == 1 and pb8 >= _V7X_SPLIT_ROWS:
            n_steps = 2
        tb = _round_up(_cdiv(pb8, n_steps), _SUBLANE)   # adaptive: <8 pad rows/step
        pb = tb * n_steps

        need = 2 * resident_bytes + tb * bytes_per_row
        vmem_limit = int(max(min(int(need * 1.5), budget),
                             need + (2 << 20), 8 << 20))
        return tb, pb, n_steps, vmem_limit

    # ---- fused pallas_call ------------------------------------------------
    def _run_fused(self, features):
        batch = features.shape[0]
        tb, pb, n_steps, vmem_limit = self._plan_tiles(batch)

        x = features
        if pb != batch or self.feat_padded != self.feature_dim:
            x = jnp.pad(x, ((0, pb - batch),
                            (0, self.feat_padded - self.feature_dim)))

        num_layers = len(self.fused_w)
        kernel = _make_fused_kernel(num_layers)

        def resident(shape):
            # weights / biases / epilogue constants: same block every grid step
            return pl.BlockSpec(shape, lambda i: (0, 0))

        in_specs = [pl.BlockSpec((tb, self.feat_padded), lambda i: (i, 0))]
        in_specs += [resident(w.shape) for w in self.fused_w]
        in_specs += [resident(b.shape) for b in self.fused_b]
        in_specs += [resident(self.posinf_vec.shape),
                     resident(self.clamp_hi_vec.shape)]
        out_spec = pl.BlockSpec((tb, self.out_padded), lambda i: (i, 0))

        out = pl.pallas_call(
            kernel,
            out_shape=jax.ShapeDtypeStruct((pb, self.out_padded), jnp.float32),
            grid_spec=pltpu.PrefetchScalarGridSpec(
                num_scalar_prefetch=0,
                grid=(n_steps,),
                in_specs=in_specs,
                out_specs=out_spec,
            ),
            compiler_params=pltpu.CompilerParams(
                dimension_semantics=("parallel",),
                vmem_limit_bytes=vmem_limit,
            ),
        )(x, *self.fused_w, *self.fused_b,
          self.posinf_vec, self.clamp_hi_vec)

        return out[:batch]

    # ---- public API (matches the PyTorch module) --------------------------
    def forward(self, features):
        out = self._run_fused(features)
        actor = out[:, :self.out_pi]                              # lane-aligned start (0)
        critic = out[:, self.vf_col_start:self.vf_col_start + self.out_vf]  # 128-aligned
        return actor, critic

    def forward_actor(self, features):
        # single fused launch; at these sizes launch/DMA overhead dominates, so
        # computing the (tiny) critic columns alongside is effectively free.
        return self._run_fused(features)[:, :self.out_pi]

    def forward_critic(self, features):
        out = self._run_fused(features)
        return out[:, self.vf_col_start:self.vf_col_start + self.out_vf]


# ---- pure-JAX reference (unfused weights) ----------------------------------
def _reference(features, weights, biases, out_posinf, out_neginf, clamp_lo, clamp_hi):
    x = jnp.nan_to_num(features, nan=0.0, posinf=1.0, neginf=-1.0)
    for w, b in zip(weights, biases):
        x = jnp.maximum(x @ w + b, 0.0)
    x = jnp.nan_to_num(x, nan=0.0, posinf=out_posinf, neginf=out_neginf)
    return jnp.clip(x, clamp_lo, clamp_hi)


if __name__ == "__main__":
    key = jax.random.PRNGKey(0)
    key, k_feat, k_feat2, k_params = jax.random.split(key, 4)

    batch = 8
    feature_dim = 32
    net_arch = {"pi": [64, 32], "vf": [64, 32]}

    extractor = CustomMlpExtractorPallas(feature_dim, net_arch, k_params)

    features = jax.random.normal(k_feat, (batch, feature_dim), dtype=jnp.float32)

    # finite-input check
    actor_out, critic_out = extractor.forward(features)
    actor_out = jax.block_until_ready(actor_out)
    critic_out = jax.block_until_ready(critic_out)

    actor_ref = _reference(features, extractor.pi_w, extractor.pi_b, 2.0, -2.0, -5.0, 5.0)
    critic_ref = _reference(features, extractor.vf_w, extractor.vf_b, 10.0, -10.0, -20.0, 20.0)

    assert actor_out.shape == (batch, net_arch["pi"][-1])
    assert critic_out.shape == (batch, net_arch["vf"][-1])
    assert jnp.allclose(actor_out, actor_ref, atol=1e-5, rtol=1e-5)
    assert jnp.allclose(critic_out, critic_ref, atol=1e-5, rtol=1e-5)

    # non-finite input check (sanitization path)
    features_bad = features.at[0, 0].set(jnp.nan)
    features_bad = features_bad.at[1, 3].set(jnp.inf)
    features_bad = features_bad.at[2, 5].set(-jnp.inf)
    a_bad, c_bad = extractor.forward(features_bad)
    a_bad = jax.block_until_ready(a_bad)
    c_bad = jax.block_until_ready(c_bad)
    a_bad_ref = _reference(features_bad, extractor.pi_w, extractor.pi_b, 2.0, -2.0, -5.0, 5.0)
    c_bad_ref = _reference(features_bad, extractor.vf_w, extractor.vf_b, 10.0, -10.0, -20.0, 20.0)
    assert jnp.allclose(a_bad, a_bad_ref, atol=1e-5, rtol=1e-5)
    assert jnp.allclose(c_bad, c_bad_ref, atol=1e-5, rtol=1e-5)

    # non-multiple-of-8 batch: exercises adaptive row padding / tiling path
    batch2 = 203
    features2 = jax.random.normal(k_feat2, (batch2, feature_dim), dtype=jnp.float32)
    a2, c2 = extractor.forward(features2)
    a2 = jax.block_until_ready(a2)
    c2 = jax.block_until_ready(c2)
    a2_ref = _reference(features2, extractor.pi_w, extractor.pi_b, 2.0, -2.0, -5.0, 5.0)
    c2_ref = _reference(features2, extractor.vf_w, extractor.vf_b, 10.0, -10.0, -20.0, 20.0)
    assert a2.shape == (batch2, net_arch["pi"][-1])
    assert c2.shape == (batch2, net_arch["vf"][-1])
    assert jnp.allclose(a2, a2_ref, atol=1e-5, rtol=1e-5)
    assert jnp.allclose(c2, c2_ref, atol=1e-5, rtol=1e-5)

    print("KERNEL_OK")
</pallas_src>

<mosaic_0001>
module attributes {stable_mosaic.version = 11 : i64} {
  func.func @kernel(%arg0: i32, %arg1: memref<8x128xf32, #tpu.memory_space<vmem>>, %arg2: memref<128x128xf32, #tpu.memory_space<vmem>>, %arg3: memref<128x256xf32, #tpu.memory_space<vmem>>, %arg4: memref<1x128xf32, #tpu.memory_space<vmem>>, %arg5: memref<1x256xf32, #tpu.memory_space<vmem>>, %arg6: memref<1x256xf32, #tpu.memory_space<vmem>>, %arg7: memref<1x256xf32, #tpu.memory_space<vmem>>, %arg8: memref<8x256xf32, #tpu.memory_space<vmem>>) attributes {dimension_semantics = [#tpu.dimension_semantics<parallel>], iteration_bounds = array<i64: 1>, scalar_prefetch = 0 : i64, scratch_operands = 0 : i64, tpu.core_type = #tpu.core_type<tc>, window_params = [{transform_indices = @transform_0, window_bounds = array<i64: 8, 128>}, {pipeline_mode = #tpu.pipeline_mode<synchronous>, transform_indices = @transform_1, window_bounds = array<i64: 128, 128>}, {pipeline_mode = #tpu.pipeline_mode<synchronous>, transform_indices = @transform_2, window_bounds = array<i64: 128, 256>}, {pipeline_mode = #tpu.pipeline_mode<synchronous>, transform_indices = @transform_3, window_bounds = array<i64: 1, 128>}, {pipeline_mode = #tpu.pipeline_mode<synchronous>, transform_indices = @transform_4, window_bounds = array<i64: 1, 256>}, {pipeline_mode = #tpu.pipeline_mode<synchronous>, transform_indices = @transform_5, window_bounds = array<i64: 1, 256>}, {pipeline_mode = #tpu.pipeline_mode<synchronous>, transform_indices = @transform_6, window_bounds = array<i64: 1, 256>}, {transform_indices = @transform_7, window_bounds = array<i64: 8, 256>}]} {
    %c0 = arith.constant 0 : index
    %c0_0 = arith.constant 0 : index
    %0 = vector.load %arg1[%c0, %c0_0] : memref<8x128xf32, #tpu.memory_space<vmem>>, vector<8x128xf32>
    %1 = arith.cmpf one, %0, %0 : vector<8x128xf32>
    %cst = arith.constant 0.000000e+00 : f32
    %2 = vector.broadcast %cst : f32 to vector<8x128xf32>
    %3 = arith.select %1, %2, %0 : vector<8x128xi1>, vector<8x128xf32>
    %cst_1 = arith.constant 0x7F800000 : f32
    %4 = vector.broadcast %cst_1 : f32 to vector<8x128xf32>
    %5 = arith.cmpf oeq, %3, %4 : vector<8x128xf32>
    %cst_2 = arith.constant 1.000000e+00 : f32
    %6 = vector.broadcast %cst_2 : f32 to vector<8x128xf32>
    %7 = arith.select %5, %6, %3 : vector<8x128xi1>, vector<8x128xf32>
    %cst_3 = arith.constant 0xFF800000 : f32
    %8 = vector.broadcast %cst_3 : f32 to vector<8x128xf32>
    %9 = arith.cmpf oeq, %7, %8 : vector<8x128xf32>
    %cst_4 = arith.constant -1.000000e+00 : f32
    %10 = vector.broadcast %cst_4 : f32 to vector<8x128xf32>
    %11 = arith.select %9, %10, %7 : vector<8x128xi1>, vector<8x128xf32>
    %c0_5 = arith.constant 0 : index
    %c0_6 = arith.constant 0 : index
    %12 = vector.load %arg2[%c0_5, %c0_6] : memref<128x128xf32, #tpu.memory_space<vmem>>, vector<128x128xf32>
    %cst_7 = arith.constant dense<0.000000e+00> : vector<8x128xf32>
    %13 = tpu.matmul %11, %12, %cst_7 {dimension_numbers = #tpu.dot_dimension_numbers<[1], [0], [0], [1], [0, 0, 1, 1], [], []>} : vector<8x128xf32>, vector<128x128xf32>, vector<8x128xf32> -> vector<8x128xf32>
    %c0_8 = arith.constant 0 : index
    %c0_9 = arith.constant 0 : index
    %14 = vector.load %arg4[%c0_8, %c0_9] : memref<1x128xf32, #tpu.memory_space<vmem>>, vector<1x128xf32>
    %15 = vector.broadcast %14 : vector<1x128xf32> to vector<8x128xf32>
    %16 = arith.addf %13, %15 : vector<8x128xf32>
    %cst_10 = arith.constant 0.000000e+00 : f32
    %17 = vector.broadcast %cst_10 : f32 to vector<8x128xf32>
    %18 = arith.maximumf %16, %17 : vector<8x128xf32>
    %c0_11 = arith.constant 0 : index
    %c0_12 = arith.constant 0 : index
    %19 = vector.load %arg3[%c0_11, %c0_12] : memref<128x256xf32, #tpu.memory_space<vmem>>, vector<128x256xf32>
    %cst_13 = arith.constant dense<0.000000e+00> : vector<8x256xf32>
    %20 = tpu.matmul %18, %19, %cst_13 {dimension_numbers = #tpu.dot_dimension_numbers<[1], [0], [0], [1], [0, 0, 1, 1], [], []>} : vector<8x128xf32>, vector<128x256xf32>, vector<8x256xf32> -> vector<8x256xf32>
    %c0_14 = arith.constant 0 : index
    %c0_15 = arith.constant 0 : index
    %21 = vector.load %arg5[%c0_14, %c0_15] : memref<1x256xf32, #tpu.memory_space<vmem>>, vector<1x256xf32>
    %22 = vector.broadcast %21 : vector<1x256xf32> to vector<8x256xf32>
    %23 = arith.addf %20, %22 : vector<8x256xf32>
    %cst_16 = arith.constant 0.000000e+00 : f32
    %24 = vector.broadcast %cst_16 : f32 to vector<8x256xf32>
    %25 = arith.maximumf %23, %24 : vector<8x256xf32>
    %26 = arith.cmpf one, %25, %25 : vector<8x256xf32>
    %cst_17 = arith.constant 0.000000e+00 : f32
    %27 = vector.broadcast %cst_17 : f32 to vector<8x256xf32>
    %28 = arith.select %26, %27, %25 : vector<8x256xi1>, vector<8x256xf32>
    %cst_18 = arith.constant 0x7F800000 : f32
    %29 = vector.broadcast %cst_18 : f32 to vector<8x256xf32>
    %30 = arith.cmpf oeq, %28, %29 : vector<8x256xf32>
    %c0_19 = arith.constant 0 : index
    %c0_20 = arith.constant 0 : index
    %31 = vector.load %arg6[%c0_19, %c0_20] : memref<1x256xf32, #tpu.memory_space<vmem>>, vector<1x256xf32>
    %32 = vector.shape_cast %31 : vector<1x256xf32> to vector<1x256xf32>
    %33 = vector.broadcast %32 : vector<1x256xf32> to vector<8x256xf32>
    %34 = arith.select %30, %33, %28 : vector<8x256xi1>, vector<8x256xf32>
    %c0_21 = arith.constant 0 : index
    %c0_22 = arith.constant 0 : index
    %35 = vector.load %arg7[%c0_21, %c0_22] : memref<1x256xf32, #tpu.memory_space<vmem>>, vector<1x256xf32>
    %36 = vector.broadcast %35 : vector<1x256xf32> to vector<8x256xf32>
    %37 = arith.minimumf %34, %36 : vector<8x256xf32>
    %c0_23 = arith.constant 0 : index
    %c0_24 = arith.constant 0 : index
    %38 = vector.load %arg8[%c0_23, %c0_24] : memref<8x256xf32, #tpu.memory_space<vmem>>, vector<8x256xf32>
    tpu.vector_store %arg8[%c0_23, %c0_24], %37 {strides = array<i32>} : memref<8x256xf32, #tpu.memory_space<vmem>>, vector<8x256xf32>,
    return
  }
  func.func @transform_0(%arg0: i32) -> (i32, i32) {
    %c0_i32 = arith.constant 0 : i32
    %c0_i32_0 = arith.constant 0 : i32
    return %arg0, %c0_i32 : i32, i32
  }
  func.func @transform_1(%arg0: i32) -> (i32, i32) {
    %c0_i32 = arith.constant 0 : i32
    %c0_i32_0 = arith.constant 0 : i32
    %c0_i32_1 = arith.constant 0 : i32
    return %c0_i32, %c0_i32_0 : i32, i32
  }
  func.func @transform_2(%arg0: i32) -> (i32, i32) {
    %c0_i32 = arith.constant 0 : i32
    %c0_i32_0 = arith.constant 0 : i32
    %c0_i32_1 = arith.constant 0 : i32
    return %c0_i32, %c0_i32_0 : i32, i32
  }
  func.func @transform_3(%arg0: i32) -> (i32, i32) {
    %c0_i32 = arith.constant 0 : i32
    %c0_i32_0 = arith.constant 0 : i32
    %c0_i32_1 = arith.constant 0 : i32
    return %c0_i32, %c0_i32_0 : i32, i32
  }
  func.func @transform_4(%arg0: i32) -> (i32, i32) {
    %c0_i32 = arith.constant 0 : i32
    %c0_i32_0 = arith.constant 0 : i32
    %c0_i32_1 = arith.constant 0 : i32
    return %c0_i32, %c0_i32_0 : i32, i32
  }
  func.func @transform_5(%arg0: i32) -> (i32, i32) {
    %c0_i32 = arith.constant 0 : i32
    %c0_i32_0 = arith.constant 0 : i32
    %c0_i32_1 = arith.constant 0 : i32
    return %c0_i32, %c0_i32_0 : i32, i32
  }
  func.func @transform_6(%arg0: i32) -> (i32, i32) {
    %c0_i32 = arith.constant 0 : i32
    %c0_i32_0 = arith.constant 0 : i32
    %c0_i32_1 = arith.constant 0 : i32
    return %c0_i32, %c0_i32_0 : i32, i32
  }
  func.func @transform_7(%arg0: i32) -> (i32, i32) {
    %c0_i32 = arith.constant 0 : i32
    %c0_i32_0 = arith.constant 0 : i32
    return %arg0, %c0_i32 : i32, i32
  }
}

</mosaic_0001>

<llo_original>
// kernel: tpu_custom_call.1
$region0: #{tpu_custom_call.1}
  #allocation0 [shape = 'u32[]', space=smem, size = 0x4, offset = 0x4, fixed_abs, tag = 'smem constant byte address 0x4 - core index']
  #allocation1 [shape = 'u32[72,128]{1,0:T(1,128)}', space=vmem, size = 0x9000, scoped, tag = 'internal scratch']
  %s0 = inlined_call_operand.hbm [shape: f32[8,128], index: 0, kind: input, shape index: {}]
  %s1 = inlined_call_operand.hbm [shape: f32[128,128], index: 1, kind: input, shape index: {}]
  %s2 = inlined_call_operand.hbm [shape: f32[128,256], index: 2, kind: input, shape index: {}]
  %s3 = inlined_call_operand.hbm [shape: f32[1,128], index: 3, kind: input, shape index: {}]
  %s4 = inlined_call_operand.vmem [shape: f32[1,256], index: 4, kind: input, shape index: {}]
  %s5 = inlined_call_operand.vmem [shape: f32[1,256], index: 5, kind: input, shape index: {}]
  %s6 = inlined_call_operand.hbm [shape: f32[1,256], index: 6, kind: input, shape index: {}]
  %s7 = inlined_call_operand.hbm [shape: f32[8,256], index: 7, kind: output, shape index: {}]
  %s8 = sld [smem:[#allocation0]]
  $region58: #{tpu_custom_call.1} parent=0
    _
  %s10 = ssub.s32 1, %s8
  %s11 = scalar_select 0, %s10, %s8
  $region1: #{tpu_custom_call.1} parent=0
    #allocation2 [shape = 'u8[4096]{0}', space=vmem, size = 0x1000, scoped, tag = 'input window, operand 0, single buffered']
    #allocation3 [shape = 's32[1]{0}', space=sflag, size = 0x4, scoped, tag = 'scoped memory for tpu_custom_call.1']
    #allocation4 [shape = 's32[1]{0}', space=sflag, size = 0x4, scoped, tag = 'scoped memory for tpu_custom_call.1']
    #allocation5 [shape = 'u8[65536]{0}', space=vmem, size = 0x10000, scoped, tag = 'input window, operand 1, single buffered']
    #allocation6 [shape = 's32[1]{0}', space=sflag, size = 0x4, scoped, tag = 'scoped memory for tpu_custom_call.1']
    #allocation7 [shape = 'u8[131072]{0}', space=vmem, size = 0x20000, scoped, tag = 'input window, operand 2, single buffered']
    #allocation8 [shape = 'u8[512]{0}', space=vmem, size = 0x400, scoped, tag = 'input window, operand 3, single buffered']
    #allocation9 [shape = 's32[1]{0}', space=sflag, size = 0x4, scoped, tag = 'scoped memory for tpu_custom_call.1']
    #allocation10 [shape = 'u8[1024]{0}', space=vmem, size = 0x400, scoped, tag = 'input window, operand 6, single buffered']
    #allocation11 [shape = 'u8[8192]{0}', space=vmem, size = 0x2000, scoped, tag = 'output window, operand 0, single buffered']
    %12 = vsyncpa [#allocation3], 0
    %13 = vsyncpa [#allocation6], 0
    %14 = vsyncpa [#allocation9], 0
    %15 = vsyncpa [#allocation4], 0
    // Predicated region
    $region2: #{tpu_custom_call.1} parent=1 // pred_check
      _
    $region3: #{tpu_custom_call.1} parent=1 // pred_check_branch
      %17 = sbr.rel (0) target = $region5
    $region4: #{tpu_custom_call.1} parent=1 // pred_region
      %19 = vsyncadd [#allocation3], 0
      %s21 = sshll.u32 %s0, 4
      %s22 = int_to_ptr.hbm [resolvable:$true] %s21
      %s23 = sshll.u32 [#allocation2], 4
      %s24 = int_to_ptr.vmem [resolvable:$true] %s23
      %26 = dma.hbm_to_vmem [thread:$0]  %s22, 128, %s24, [#allocation3]
    $region5: #{tpu_custom_call.1} parent=1 // pred_fallthru
      _
    // Predicated region
    $region6: #{tpu_custom_call.1} parent=1 // pred_check
      _
    $region7: #{tpu_custom_call.1} parent=1 // pred_check_branch
      %28 = sbr.rel (0) target = $region9
    $region8: #{tpu_custom_call.1} parent=1 // pred_region
      %30 = vsyncadd [#allocation6], 0
      %s31 = sshll.u32 %s1, 4
      %s32 = int_to_ptr.hbm [resolvable:$true] %s31
      %s33 = sshll.u32 [#allocation5], 4
      %s34 = int_to_ptr.vmem [resolvable:$true] %s33
      %39 = dma.hbm_to_vmem [thread:$0]  %s32, 2048, %s34, [#allocation6], 128, 128, 8
    $region9: #{tpu_custom_call.1} parent=1 // pred_fallthru
      _
    // Predicated region
    $region10: #{tpu_custom_call.1} parent=1 // pred_check
      _
    $region11: #{tpu_custom_call.1} parent=1 // pred_check_branch
      %41 = sbr.rel (0) target = $region13
    $region12: #{tpu_custom_call.1} parent=1 // pred_region
      %43 = vsyncadd [#allocation6], 0
      %s44 = sshll.u32 %s2, 4
      %s45 = int_to_ptr.hbm [resolvable:$true] %s44
      %s46 = sshll.u32 [#allocation7], 4
      %s47 = int_to_ptr.vmem [resolvable:$true] %s46
      %52 = dma.hbm_to_vmem [thread:$0]  %s45, 4096, %s47, [#allocation6], 256, 256, 16
    $region13: #{tpu_custom_call.1} parent=1 // pred_fallthru
      _
    // Predicated region
    $region14: #{tpu_custom_call.1} parent=1 // pred_check
      _
    $region15: #{tpu_custom_call.1} parent=1 // pred_check_branch
      %54 = sbr.rel (0) target = $region17
    $region16: #{tpu_custom_call.1} parent=1 // pred_region
      %56 = vsyncadd [#allocation9], 0
      %s58 = sshll.u32 %s3, 4
      %s59 = int_to_ptr.hbm [resolvable:$true] %s58
      %s60 = sshll.u32 [#allocation8], 4
      %s61 = int_to_ptr.vmem [resolvable:$true] %s60
      %63 = dma.hbm_to_vmem [thread:$0]  %s59, 16, %s61, [#allocation9]
    $region17: #{tpu_custom_call.1} parent=1 // pred_fallthru
      _
    // Predicated region
    $region18: #{tpu_custom_call.1} parent=1 // pred_check
      _
    $region19: #{tpu_custom_call.1} parent=1 // pred_check_branch
      %65 = sbr.rel (0) target = $region21
    $region20: #{tpu_custom_call.1} parent=1 // pred_region
      _
    $region21: #{tpu_custom_call.1} parent=1 // pred_fallthru
      _
    // Predicated region
    $region22: #{tpu_custom_call.1} parent=1 // pred_check
      _
    $region23: #{tpu_custom_call.1} parent=1 // pred_check_branch
      %67 = sbr.rel (0) target = $region25
    $region24: #{tpu_custom_call.1} parent=1 // pred_region
      _
    $region25: #{tpu_custom_call.1} parent=1 // pred_fallthru
      _
    // Predicated region
    $region26: #{tpu_custom_call.1} parent=1 // pred_check
      _
    $region27: #{tpu_custom_call.1} parent=1 // pred_check_branch
      %69 = sbr.rel (0) target = $region29
    $region28: #{tpu_custom_call.1} parent=1 // pred_region
      %71 = vsyncadd [#allocation9], 0
      %s73 = sshll.u32 %s6, 4
      %s74 = int_to_ptr.hbm [resolvable:$true] %s73
      %s75 = sshll.u32 [#allocation10], 4
      %s76 = int_to_ptr.vmem [resolvable:$true] %s75
      %78 = dma.hbm_to_vmem [thread:$0]  %s74, 32, %s76, [#allocation9]
    $region29: #{tpu_custom_call.1} parent=1 // pred_fallthru
      _
    // Predicated region
    $region30: #{tpu_custom_call.1} parent=1 // pred_check
      _
    $region31: #{tpu_custom_call.1} parent=1 // pred_check_branch
      %80 = sbr.rel (0) target = $region33
    $region32: #{tpu_custom_call.1} parent=1 // pred_region
      %82 = dma.done [#allocation3], 128
    $region33: #{tpu_custom_call.1} parent=1 // pred_fallthru
      _
    // Predicated region
    $region34: #{tpu_custom_call.1} parent=1 // pred_check
      _
    $region35: #{tpu_custom_call.1} parent=1 // pred_check_branch
      %84 = sbr.rel (0) target = $region37
    $region36: #{tpu_custom_call.1} parent=1 // pred_region
      %86 = dma.done [#allocation6], 2048
    $region37: #{tpu_custom_call.1} parent=1 // pred_fallthru
      _
    // Predicated region
    $region38: #{tpu_custom_call.1} parent=1 // pred_check
      _
    $region39: #{tpu_custom_call.1} parent=1 // pred_check_branch
      %88 = sbr.rel (0) target = $region41
    $region40: #{tpu_custom_call.1} parent=1 // pred_region
      %90 = dma.done [#allocation6], 4096
    $region41: #{tpu_custom_call.1} parent=1 // pred_fallthru
      _
    // Predicated region
    $region42: #{tpu_custom_call.1} parent=1 // pred_check
      _
    $region43: #{tpu_custom_call.1} parent=1 // pred_check_branch
      %92 = sbr.rel (0) target = $region45
    $region44: #{tpu_custom_call.1} parent=1 // pred_region
      %94 = dma.done [#allocation9], 16
    $region45: #{tpu_custom_call.1} parent=1 // pred_fallthru
      _
    // Predicated region
    $region46: #{tpu_custom_call.1} parent=1 // pred_check
      _
    $region47: #{tpu_custom_call.1} parent=1 // pred_check_branch
      %96 = sbr.rel (0) target = $region49
    $region48: #{tpu_custom_call.1} parent=1 // pred_region
      %98 = dma.done [#allocation9], 32
    $region49: #{tpu_custom_call.1} parent=1 // pred_fallthru
      _
    %v99 = vld [vmem:[#allocation2] sm:$0xff]
    %vm100 = vcmp.ne.f32.partialorder %v99, %v99
    %v101 = vsel %vm100, 0.0, %v99
    %vm102 = vcmp.eq.f32.partialorder %v101, inf
    %v103 = vsel %vm102, 1.0, %v101
    %vm104 = vcmp.eq.f32.partialorder %v103, -inf
    %v105 = vsel %vm104, -1.0, %v103
    %v106 = vld [vmem:[#allocation5] sm:$0xff]
    %v107 = vld [vmem:[#allocation5 + $0x8] sm:$0xff]
    %v108 = vld [vmem:[#allocation5 + $0x10] sm:$0xff]
    %v109 = vld [vmem:[#allocation5 + $0x18] sm:$0xff]
    %v110 = vld [vmem:[#allocation5 + $0x20] sm:$0xff]
    %v111 = vld [vmem:[#allocation5 + $0x28] sm:$0xff]
    %v112 = vld [vmem:[#allocation5 + $0x30] sm:$0xff]
    %v113 = vld [vmem:[#allocation5 + $0x38] sm:$0xff]
    %v114 = vld [vmem:[#allocation5 + $0x40] sm:$0xff]
    %v115 = vld [vmem:[#allocation5 + $0x48] sm:$0xff]
    %v116 = vld [vmem:[#allocation5 + $0x50] sm:$0xff]
    %v117 = vld [vmem:[#allocation5 + $0x58] sm:$0xff]
    %v118 = vld [vmem:[#allocation5 + $0x60] sm:$0xff]
    %v119 = vld [vmem:[#allocation5 + $0x68] sm:$0xff]
    %v120 = vld [vmem:[#allocation5 + $0x70] sm:$0xff]
    %v121 = vld [vmem:[#allocation5 + $0x78] sm:$0xff]
    %v122 = vld [vmem:[#allocation8] sm:$0x1]
    %v124 = vperm.slane %v122, 0
    %126 = vmatpush.msra.mxu0 %v121
    %127 = vmatpush.msra.mxu0 %v120
    %128 = vmatpush.msra.mxu0 %v119
    %129 = vmatpush.msra.mxu0 %v118
    %130 = vmatpush.msra.mxu0 %v117
    %131 = vmatpush.msra.mxu0 %v116
    %132 = vmatpush.msra.mxu0 %v115
    %133 = vmatpush.msra.mxu0 %v114
    %134 = vmatpush.msra.mxu0 %v113
    %135 = vmatpush.msra.mxu0 %v112
    %136 = vmatpush.msra.mxu0 %v111
    %137 = vmatpush.msra.mxu0 %v110
    %138 = vmatpush.msra.mxu0 %v109
    %139 = vmatpush.msra.mxu0 %v108
    %140 = vmatpush.msra.mxu0 %v107
    %141 = vmatpush.msra.mxu0 %v106
    %142 = vmatmul.f32.gmra.mxu0 %v105
    %v143 = vpop.f32.mrf.mxu0
    %v144 = vadd.f32 %v124, %v143
    %145 = vdwg.mxu0
    %v146 = vmax.f32 %v144, 0.0
    %v147 = vld [vmem:[#allocation7] sm:$0xff]
    %v148 = vld [vmem:[#allocation7 + $0x8] sm:$0xff]
    %v149 = vld [vmem:[#allocation7 + $0x10] sm:$0xff]
    %v150 = vld [vmem:[#allocation7 + $0x18] sm:$0xff]
    %v151 = vld [vmem:[#allocation7 + $0x20] sm:$0xff]
    %v152 = vld [vmem:[#allocation7 + $0x28] sm:$0xff]
    %v153 = vld [vmem:[#allocation7 + $0x30] sm:$0xff]
    %v154 = vld [vmem:[#allocation7 + $0x38] sm:$0xff]
    %v155 = vld [vmem:[#allocation7 + $0x40] sm:$0xff]
    %v156 = vld [vmem:[#allocation7 + $0x48] sm:$0xff]
    %v157 = vld [vmem:[#allocation7 + $0x50] sm:$0xff]
    %v158 = vld [vmem:[#allocation7 + $0x58] sm:$0xff]
    %v159 = vld [vmem:[#allocation7 + $0x60] sm:$0xff]
    %v160 = vld [vmem:[#allocation7 + $0x68] sm:$0xff]
    %v161 = vld [vmem:[#allocation7 + $0x70] sm:$0xff]
    %v162 = vld [vmem:[#allocation7 + $0x78] sm:$0xff]
    %v163 = vld [vmem:[#allocation7 + $0x80] sm:$0xff]
    %v164 = vld [vmem:[#allocation7 + $0x88] sm:$0xff]
    %v165 = vld [vmem:[#allocation7 + $0x90] sm:$0xff]
    %v166 = vld [vmem:[#allocation7 + $0x98] sm:$0xff]
    %v167 = vld [vmem:[#allocation7 + $0xa0] sm:$0xff]
    %v168 = vld [vmem:[#allocation7 + $0xa8] sm:$0xff]
    %v169 = vld [vmem:[#allocation7 + $0xb0] sm:$0xff]
    %v170 = vld [vmem:[#allocation7 + $0xb8] sm:$0xff]
    %v171 = vld [vmem:[#allocation7 + $0xc0] sm:$0xff]
    %v172 = vld [vmem:[#allocation7 + $0xc8] sm:$0xff]
    %v173 = vld [vmem:[#allocation7 + $0xd0] sm:$0xff]
    %v174 = vld [vmem:[#allocation7 + $0xd8] sm:$0xff]
    %v175 = vld [vmem:[#allocation7 + $0xe0] sm:$0xff]
    %v176 = vld [vmem:[#allocation7 + $0xe8] sm:$0xff]
    %v177 = vld [vmem:[#allocation7 + $0xf0] sm:$0xff]
    %v178 = vld [vmem:[#allocation7 + $0xf8] sm:$0xff]
    %v179 = vld [vmem:[%s4] sm:$0x3]
    %v181 = vperm.slane %v179, 0
    %v182 = vperm.slane %v179, 1
    %185 = vmatpush.msra.mxu0 %v177
    %186 = vmatpush.msra.mxu0 %v175
    %187 = vmatpush.msra.mxu0 %v173
    %188 = vmatpush.msra.mxu0 %v171
    %189 = vmatpush.msra.mxu0 %v169
    %190 = vmatpush.msra.mxu0 %v167
    %191 = vmatpush.msra.mxu0 %v165
    %192 = vmatpush.msra.mxu0 %v163
    %193 = vmatpush.msra.mxu0 %v161
    %194 = vmatpush.msra.mxu0 %v159
    %195 = vmatpush.msra.mxu0 %v157
    %196 = vmatpush.msra.mxu0 %v155
    %197 = vmatpush.msra.mxu0 %v153
    %198 = vmatpush.msra.mxu0 %v151
    %199 = vmatpush.msra.mxu0 %v149
    %200 = vmatpush.msra.mxu0 %v147
    %201 = vmatmul.f32.gmra.mxu0 %v146
    %v202 = vpop.f32.mrf.mxu0
    %v203 = vadd.f32 %v181, %v202
    %204 = vdwg.mxu0
    %205 = vmatpush.msra.mxu0 %v178
    %206 = vmatpush.msra.mxu0 %v176
    %207 = vmatpush.msra.mxu0 %v174
    %208 = vmatpush.msra.mxu0 %v172
    %209 = vmatpush.msra.mxu0 %v170
    %210 = vmatpush.msra.mxu0 %v168
    %211 = vmatpush.msra.mxu0 %v166
    %212 = vmatpush.msra.mxu0 %v164
    %213 = vmatpush.msra.mxu0 %v162
    %214 = vmatpush.msra.mxu0 %v160
    %215 = vmatpush.msra.mxu0 %v158
    %216 = vmatpush.msra.mxu0 %v156
    %217 = vmatpush.msra.mxu0 %v154
    %218 = vmatpush.msra.mxu0 %v152
    %219 = vmatpush.msra.mxu0 %v150
    %220 = vmatpush.msra.mxu0 %v148
    %221 = vmatmul.f32.gmra.mxu0 %v146
    %v222 = vpop.f32.mrf.mxu0
    %v223 = vadd.f32 %v182, %v222
    %224 = vdwg.mxu0
    %v225 = vmax.f32 %v203, 0.0
    %v226 = vmax.f32 %v223, 0.0
    %vm227 = vcmp.ne.f32.partialorder %v225, %v225
    %vm228 = vcmp.ne.f32.partialorder %v226, %v226
    %v229 = vsel %vm227, 0.0, %v225
    %v230 = vsel %vm228, 0.0, %v226
    %vm231 = vcmp.eq.f32.partialorder %v229, inf
    %vm232 = vcmp.eq.f32.partialorder %v230, inf
    %v233 = vld [vmem:[%s5] sm:$0x3]
    %v235 = vperm.slane %v233, 0
    %v236 = vperm.slane %v233, 1
    %v239 = vsel %vm231, %v235, %v229
    %v240 = vsel %vm232, %v236, %v230
    %v241 = vld [vmem:[#allocation10] sm:$0x3]
    %v243 = vperm.slane %v241, 0
    %v244 = vperm.slane %v241, 1
    %v247 = vmin.f32 %v239, %v243
    %v248 = vmin.f32 %v240, %v244
    %249 = vst [vmem:[#allocation11] sm:$0xff] %v247
    %250 = vst [vmem:[#allocation11 + $0x8] sm:$0xff] %v248
    // Predicated region
    $region50: #{tpu_custom_call.1} parent=1 // pred_check
      _
    $region51: #{tpu_custom_call.1} parent=1 // pred_check_branch
      %252 = sbr.rel (0) target = $region53
    $region52: #{tpu_custom_call.1} parent=1 // pred_region
      %254 = vsyncadd [#allocation4], 0
      %s256 = sshll.u32 [#allocation11], 4
      %s257 = int_to_ptr.vmem [resolvable:$true] %s256
      %s258 = sshll.u32 %s7, 4
      %s259 = int_to_ptr.hbm [resolvable:$true] %s258
      %261 = dma.vmem_to_hbm [thread:$0]  %s257, 256, %s259, [#allocation4]
    $region53: #{tpu_custom_call.1} parent=1 // pred_fallthru
      _
    // Predicated region
    $region54: #{tpu_custom_call.1} parent=1 // pred_check
      _
    $region55: #{tpu_custom_call.1} parent=1 // pred_check_branch
      %263 = sbr.rel (0) target = $region57
    $region56: #{tpu_custom_call.1} parent=1 // pred_region
      %265 = dma.done [#allocation4], 256
    $region57: #{tpu_custom_call.1} parent=1 // pred_fallthru
      _
    %266 = vsyncpa [#allocation3], 1
    %267 = vsyncpa [#allocation6], 1
    %268 = vsyncpa [#allocation9], 1
    %269 = vsyncpa [#allocation4], 1

</llo_original>
